<compile_context>
chip_gen: v7x
topology: tpu7x:2x2x1
jax: 0.10.0
libtpu: 0.0.40
codegen_flags: <defaults>
</compile_context>

<pallas_src>
import functools

import jax
import jax.numpy as jnp
from jax.experimental import pallas as pl
from jax.experimental.pallas import tpu as pltpu


def _pick_tile(dim, pref, align):
    """Largest multiple of `align` (<= pref) dividing `dim`, else the full dim.

    Note: the full-dim fallback may be <128 in the lane dimension (e.g. a
    bi_in that is not a multiple of 128); that is correct but produces masked
    stores -- a known perf cliff.
    """
    t = min(pref, dim)
    t -= t % align
    while t >= align:
        if dim % t == 0:
            return t
        t -= align
    return dim


# ---------------------------------------------------------------------------
# forward(x) = fc(x):   y = x @ W_fc.T + b_fc
# ---------------------------------------------------------------------------
def prepare_fc_params(fc_w, fc_b, compute_dtype=None):
    """One-time parameter-layout glue, hoisted out of the per-call forward.

    fc_w: (bi_in, in_dim) torch-layout Linear weight -> (in_dim, bi_in) so the
    Pallas matmul writes a lane-dense (B, bi_in) output.  Bias stays f32.
    """
    w_t = jnp.transpose(fc_w, (1, 0))
    w_t = w_t.astype(compute_dtype if compute_dtype is not None else jnp.float32)
    b2 = fc_b.reshape(1, -1).astype(jnp.float32)
    return w_t, b2


def _linear_single_pass_kernel(x_ref, wt_ref, b_ref, o_ref):
    # Single reduction step: no VMEM accumulator, no init/finalize epilogue.
    o_ref[...] = (jnp.dot(x_ref[...], wt_ref[...],
                          preferred_element_type=jnp.float32)
                  + b_ref[...]).astype(o_ref.dtype)


def _linear_acc_kernel(x_ref, wt_ref, b_ref, o_ref, acc_ref):
    k = pl.program_id(2)

    @pl.when(k == 0)
    def _():
        acc_ref[...] = jnp.zeros_like(acc_ref)

    acc_ref[...] += jnp.dot(x_ref[...], wt_ref[...],
                            preferred_element_type=jnp.float32)

    @pl.when(k == pl.num_programs(2) - 1)
    def _():
        o_ref[...] = (acc_ref[...] + b_ref[...]).astype(o_ref.dtype)


def bilinear_metric_forward(x, w_t, b2, *, tm=None, tn=None, tk=None):
    """x: (B, in_dim), w_t: (in_dim, bi_in), b2: (1, bi_in) -> (B, bi_in) f32."""
    B, Din = x.shape
    Dout = w_t.shape[1]
    x = x.astype(w_t.dtype)                      # bf16 MXU operands if requested

    sub = 16 if w_t.dtype == jnp.bfloat16 else 8  # avoid half-packed bf16 vregs
    tm = tm or _pick_tile(B, 512, sub)
    tn = tn or _pick_tile(Dout, 512, 128)
    tk = tk or _pick_tile(Din, 1024, 128)
    assert B % tm == 0 and Dout % tn == 0 and Din % tk == 0

    if Din == tk:
        # Single reduction step (common for in_dim <= 1024, and the demo
        # shapes collapse all the way to a single grid point).
        return pl.pallas_call(
            _linear_single_pass_kernel,
            out_shape=jax.ShapeDtypeStruct((B, Dout), jnp.float32),
            grid_spec=pltpu.PrefetchScalarGridSpec(
                num_scalar_prefetch=0,
                grid=(B // tm, Dout // tn),
                in_specs=[
                    pl.BlockSpec((tm, Din), lambda i, j: (i, 0)),
                    pl.BlockSpec((Din, tn), lambda i, j: (0, j)),
                    pl.BlockSpec((1, tn), lambda i, j: (0, j)),
                ],
                out_specs=pl.BlockSpec((tm, tn), lambda i, j: (i, j)),
            ),
            compiler_params=pltpu.CompilerParams(
                dimension_semantics=("parallel", "parallel")),
        )(x, w_t, b2)

    # Multi-step reduction (e.g. the module default in_dim=4096): reduction
    # axis last, f32 VMEM accumulator, bias fused at the final k step.
    return pl.pallas_call(
        _linear_acc_kernel,
        out_shape=jax.ShapeDtypeStruct((B, Dout), jnp.float32),
        grid_spec=pltpu.PrefetchScalarGridSpec(
            num_scalar_prefetch=0,
            grid=(B // tm, Dout // tn, Din // tk),
            in_specs=[
                pl.BlockSpec((tm, tk), lambda i, j, k: (i, k)),
                pl.BlockSpec((tk, tn), lambda i, j, k: (k, j)),
                pl.BlockSpec((1, tn), lambda i, j, k: (0, j)),
            ],
            out_specs=pl.BlockSpec((tm, tn), lambda i, j, k: (i, j)),
            scratch_shapes=[pltpu.VMEM((tm, tn), jnp.float32)],
        ),
        compiler_params=pltpu.CompilerParams(
            dimension_semantics=("parallel", "parallel", "arbitrary")),
    )(x, w_t, b2)


# ---------------------------------------------------------------------------
# Bilinear triplet-margin helper on the module's `bfc` sub-layer (NOT part of
# forward(); kept as the improved version of the previously reviewed kernel).
#   bfc(x1, x2)[b, k] = sum_{i,j} x1[b,i] * W[k,i,j] * x2[b,j] + bias[k]
#   loss = mean(clamp(bfc(a,p).min(1)[0] - bfc(a,n).min(1)[0] + margin, 0))
# ---------------------------------------------------------------------------
def _bilinear_triplet_kernel(margin, a_ref, p_ref, n_ref, w_ref, b_ref,
                             hinge_ref):
    a = a_ref[...]                                   # (tm, D1) MXU operand
    p = p_ref[...]                                   # (tm, D2) f32
    n = n_ref[...]
    K = w_ref.shape[0]
    tm = a.shape[0]

    def score(k, x2):
        # y[:, k] = rowsum((a @ W[k]) * x2) + bias[k]   -- one MXU matmul plus
        # an XLU row-reduction; 1-D (tm,) result (lane-dense downstream math).
        t = jnp.dot(a, w_ref[k], preferred_element_type=jnp.float32)   # (tm, D2)
        return jnp.sum(t * x2, axis=1) + b_ref[k]                      # (tm,)

    if K <= 4:
        # Static unroll for the tiny default (bi_out == 1).
        dist_p = dist_n = None
        for k in range(K):
            yp, yn = score(k, p), score(k, n)
            dist_p = yp if dist_p is None else jnp.minimum(dist_p, yp)
            dist_n = yn if dist_n is None else jnp.minimum(dist_n, yn)
    else:
        # Bound vreg live ranges for larger K.
        def body(k, carry):
            dp, dn = carry
            return jnp.minimum(dp, score(k, p)), jnp.minimum(dn, score(k, n))
        init = (jnp.full((tm,), jnp.inf, jnp.float32),
                jnp.full((tm,), jnp.inf, jnp.float32))
        dist_p, dist_n = jax.lax.fori_loop(0, K, body, init)

    # Lane-dense write: one (tm,)-wide row of the (1, B) hinge buffer.
    hinge_ref[0, :] = jnp.maximum(dist_p - dist_n + margin, 0.0)


def bilinear_triplet_margin_loss(a, p, n, w, bias, margin=1.0, *, tm=None,
                                 compute_dtype=None):
    """a: (B, D1), p/n: (B, D2), w: (K, D1, D2), bias: (K,) -> scalar loss."""
    B, D1 = a.shape
    K, _, D2 = w.shape

    # MXU operands (a, W) may be bf16 on v6e/v7x; p/n, the elementwise product,
    # row-reduction, min and hinge stay f32 (v5e has no bf16 VALU/EUP).
    mxu_dtype = compute_dtype if compute_dtype is not None else jnp.float32
    a = a.astype(mxu_dtype)
    w = w.astype(mxu_dtype)
    p = p.astype(jnp.float32)
    n = n.astype(jnp.float32)
    bias = bias.astype(jnp.float32)

    sub = 16 if mxu_dtype == jnp.bfloat16 else 8
    tm = tm or _pick_tile(B, 256, sub)
    assert B % tm == 0

    # Resident (K, D1, D2) weight (constant index_map).  Pallas double-buffers
    # by default; for large bi_in single-buffer it so it still fits v7x's
    # 32 MiB scoped VMEM.  The small demo weight keeps the default path.
    w_bytes = K * D1 * D2 * jnp.dtype(w.dtype).itemsize
    if w_bytes > 8 * 1024 * 1024:
        w_spec = pl.BlockSpec((K, D1, D2), lambda i: (0, 0, 0),
                              pipeline_mode=pl.Buffered(1))
    else:
        w_spec = pl.BlockSpec((K, D1, D2), lambda i: (0, 0, 0))
    # TODO(synk): for weights too large even single-buffered, add a D2 grid
    # axis and accumulate the row-sum across D2 tiles instead.

    kernel = functools.partial(_bilinear_triplet_kernel, float(margin))
    hinge = pl.pallas_call(
        kernel,
        out_shape=jax.ShapeDtypeStruct((1, B), jnp.float32),   # lane-dense hinges
        grid_spec=pltpu.PrefetchScalarGridSpec(
            num_scalar_prefetch=0,
            grid=(B // tm,),
            in_specs=[
                pl.BlockSpec((tm, D1), lambda i: (i, 0)),
                pl.BlockSpec((tm, D2), lambda i: (i, 0)),
                pl.BlockSpec((tm, D2), lambda i: (i, 0)),
                w_spec,
                pl.BlockSpec(memory_space=pltpu.MemorySpace.SMEM),  # bias (K,)
            ],
            out_specs=pl.BlockSpec((1, tm), lambda i: (0, i)),
        ),
        compiler_params=pltpu.CompilerParams(
            dimension_semantics=("parallel",)),
    )(a, p, n, w, bias)
    # Per-sample hinges in-kernel; tiny global mean outside keeps the batch
    # grid axis "parallel" (megacore on v7x).
    return jnp.mean(hinge)


# ---------------------------------------------------------------------------
# Pure-JAX references
# ---------------------------------------------------------------------------
def _forward_ref(x, fc_w, fc_b):
    return jnp.dot(x, fc_w.T, precision=jax.lax.Precision.HIGHEST) + fc_b


def _triplet_ref(a, p, n, w, bias, margin):
    hi = jax.lax.Precision.HIGHEST
    yp = jnp.einsum('bi,kij,bj->bk', a, w, p, precision=hi) + bias
    yn = jnp.einsum('bi,kij,bj->bk', a, w, n, precision=hi) + bias
    dp = jnp.min(yp, axis=1)
    dn = jnp.min(yn, axis=1)
    return jnp.mean(jnp.maximum(dp - dn + margin, 0.0))


if __name__ == "__main__":
    key = jax.random.PRNGKey(0)
    # Small shapes consistent with BilinearMetric(in_dim, bi_in, bi_out=1).
    B, in_dim, bi_in, bi_out = 16, 512, 256, 1
    kx, kw, ka, kp, kn, kbw = jax.random.split(key, 6)

    x = jax.random.normal(kx, (B, in_dim), jnp.float32)
    # kaiming_normal_ on fc.weight, bias = 0 (as in the module __init__)
    fc_w = jax.random.normal(kw, (bi_in, in_dim), jnp.float32) * jnp.sqrt(2.0 / in_dim)
    fc_b = jnp.zeros((bi_in,), jnp.float32)
    y_ref = _forward_ref(x, fc_w, fc_b)

    # ---- forward(x) = fc(x), f32: defaults collapse to ONE grid point and the
    # accumulator-free single-pass kernel.
    w_t, b2 = prepare_fc_params(fc_w, fc_b)          # one-time layout glue
    y = bilinear_metric_forward(x, w_t, b2)
    jax.block_until_ready(y)
    assert jnp.allclose(y, y_ref, atol=1e-3, rtol=1e-3), \
        float(jnp.max(jnp.abs(y - y_ref)))

    # ---- same forward with bf16 MXU operands (v6e/v7x recommendation);
    # accumulation stays f32, so only mixed-precision rounding error remains.
    w_t16, b216 = prepare_fc_params(fc_w, fc_b, compute_dtype=jnp.bfloat16)
    y16 = bilinear_metric_forward(x, w_t16, b216)
    jax.block_until_ready(y16)
    assert jnp.allclose(y16, y_ref, atol=1e-1, rtol=5e-2), \
        float(jnp.max(jnp.abs(y16 - y_ref)))

    # ---- multi-k accumulator path (used when in_dim is large, e.g. the module
    # default 4096); forced here with small tiles to exercise the 3-D grid.
    y_acc = bilinear_metric_forward(x, w_t, b2, tm=8, tn=128, tk=128)
    jax.block_until_ready(y_acc)
    assert jnp.allclose(y_acc, y_ref, atol=1e-3, rtol=1e-3), \
        float(jnp.max(jnp.abs(y_acc - y_ref)))

    # ---- bilinear-triplet helper on the bfc sub-layer ----
    a = jax.random.normal(ka, (B, bi_in), jnp.float32)
    p = jax.random.normal(kp, (B, bi_in), jnp.float32)
    n = jax.random.normal(kn, (B, bi_in), jnp.float32)
    bfc_w = jax.random.normal(kbw, (bi_out, bi_in, bi_in), jnp.float32) * jnp.sqrt(2.0 / bi_in)
    bfc_b = jnp.zeros((bi_out,), jnp.float32)

    loss = bilinear_triplet_margin_loss(a, p, n, bfc_w, bfc_b, margin=1.0)
    jax.block_until_ready(loss)
    loss_ref = _triplet_ref(a, p, n, bfc_w, bfc_b, 1.0)
    assert jnp.allclose(loss, loss_ref, atol=1e-3, rtol=1e-3), \
        (float(loss), float(loss_ref))

    # TODO(synk): eval-time helpers (.test()/get_batch_accuracy) and the
    # training loop are not part of forward() and are left unimplemented.
    print("KERNEL_OK")
</pallas_src>

<mosaic_0001>
module attributes {stable_mosaic.version = 11 : i64} {
  func.func @_linear_single_pass_kernel(%arg0: i32, %arg1: i32, %arg2: memref<16x512xf32, #tpu.memory_space<vmem>>, %arg3: memref<512x256xf32, #tpu.memory_space<vmem>>, %arg4: memref<1x256xf32, #tpu.memory_space<vmem>>, %arg5: memref<16x256xf32, #tpu.memory_space<vmem>>) attributes {dimension_semantics = [#tpu.dimension_semantics<parallel>, #tpu.dimension_semantics<parallel>], iteration_bounds = array<i64: 1, 1>, scalar_prefetch = 0 : i64, scratch_operands = 0 : i64, tpu.core_type = #tpu.core_type<tc>, window_params = [{transform_indices = @transform_0, window_bounds = array<i64: 16, 512>}, {transform_indices = @transform_1, window_bounds = array<i64: 512, 256>}, {transform_indices = @transform_2, window_bounds = array<i64: 1, 256>}, {transform_indices = @transform_3, window_bounds = array<i64: 16, 256>}]} {
    %c0 = arith.constant 0 : index
    %c0_0 = arith.constant 0 : index
    %0 = vector.load %arg2[%c0, %c0_0] : memref<16x512xf32, #tpu.memory_space<vmem>>, vector<16x512xf32>
    %c0_1 = arith.constant 0 : index
    %c0_2 = arith.constant 0 : index
    %1 = vector.load %arg3[%c0_1, %c0_2] : memref<512x256xf32, #tpu.memory_space<vmem>>, vector<512x256xf32>
    %cst = arith.constant dense<0.000000e+00> : vector<16x256xf32>
    %2 = tpu.matmul %0, %1, %cst {dimension_numbers = #tpu.dot_dimension_numbers<[1], [0], [0], [1], [0, 0, 1, 1], [], []>} : vector<16x512xf32>, vector<512x256xf32>, vector<16x256xf32> -> vector<16x256xf32>
    %c0_3 = arith.constant 0 : index
    %c0_4 = arith.constant 0 : index
    %3 = vector.load %arg4[%c0_3, %c0_4] : memref<1x256xf32, #tpu.memory_space<vmem>>, vector<1x256xf32>
    %4 = vector.broadcast %3 : vector<1x256xf32> to vector<16x256xf32>
    %5 = arith.addf %2, %4 : vector<16x256xf32>
    %c0_5 = arith.constant 0 : index
    %c0_6 = arith.constant 0 : index
    %6 = vector.load %arg5[%c0_5, %c0_6] : memref<16x256xf32, #tpu.memory_space<vmem>>, vector<16x256xf32>
    tpu.vector_store %arg5[%c0_5, %c0_6], %5 {strides = array<i32>} : memref<16x256xf32, #tpu.memory_space<vmem>>, vector<16x256xf32>,
    return
  }
  func.func @transform_0(%arg0: i32, %arg1: i32) -> (i32, i32) {
    %c0_i32 = arith.constant 0 : i32
    %c0_i32_0 = arith.constant 0 : i32
    return %arg0, %c0_i32 : i32, i32
  }
  func.func @transform_1(%arg0: i32, %arg1: i32) -> (i32, i32) {
    %c0_i32 = arith.constant 0 : i32
    %c0_i32_0 = arith.constant 0 : i32
    return %c0_i32, %arg1 : i32, i32
  }
  func.func @transform_2(%arg0: i32, %arg1: i32) -> (i32, i32) {
    %c0_i32 = arith.constant 0 : i32
    %c0_i32_0 = arith.constant 0 : i32
    return %c0_i32, %arg1 : i32, i32
  }
  func.func @transform_3(%arg0: i32, %arg1: i32) -> (i32, i32) {
    %c0_i32 = arith.constant 0 : i32
    return %arg0, %arg1 : i32, i32
  }
}

</mosaic_0001>

<llo_original>
// kernel: tpu_custom_call.1
$region0: #{tpu_custom_call.1}
  #allocation0 [shape = 'u32[]', space=smem, size = 0x4, offset = 0x4, fixed_abs, tag = 'smem constant byte address 0x4 - core index']
  #allocation1 [shape = 'u32[144,128]{1,0:T(1,128)}', space=vmem, size = 0x12000, scoped, tag = 'internal scratch']
  %s0 = inlined_call_operand.hbm [shape: f32[16,512], index: 0, kind: input, shape index: {}]
  %s1 = inlined_call_operand.hbm [shape: f32[512,256], index: 1, kind: input, shape index: {}]
  %s2 = inlined_call_operand.vmem [shape: f32[1,256], index: 2, kind: input, shape index: {}]
  %s3 = inlined_call_operand.hbm [shape: f32[16,256], index: 3, kind: output, shape index: {}]
  %s4 = sld [smem:[#allocation0]]
  $region30: #{tpu_custom_call.1} parent=0
    _
  %s6 = ssub.s32 1, %s4
  %s7 = scalar_select 0, %s6, %s4
  $region1: #{tpu_custom_call.1} parent=0
    #allocation2 [shape = 'u8[32768]{0}', space=vmem, size = 0x8000, scoped, tag = 'input window, operand 0, single buffered']
    #allocation3 [shape = 's32[1]{0}', space=sflag, size = 0x4, scoped, tag = 'scoped memory for tpu_custom_call.1']
    #allocation4 [shape = 's32[1]{0}', space=sflag, size = 0x4, scoped, tag = 'scoped memory for tpu_custom_call.1']
    #allocation5 [shape = 'u8[524288]{0}', space=vmem, size = 0x80000, scoped, tag = 'input window, operand 1, single buffered']
    #allocation6 [shape = 's32[1]{0}', space=sflag, size = 0x4, scoped, tag = 'scoped memory for tpu_custom_call.1']
    #allocation7 [shape = 'u8[16384]{0}', space=vmem, size = 0x4000, scoped, tag = 'output window, operand 0, single buffered']
    %8 = vsyncpa [#allocation3], 0
    %9 = vsyncpa [#allocation6], 0
    %10 = vsyncpa [#allocation4], 0
    // Predicated region
    $region2: #{tpu_custom_call.1} parent=1 // pred_check
      _
    $region3: #{tpu_custom_call.1} parent=1 // pred_check_branch
      %12 = sbr.rel (0) target = $region5
    $region4: #{tpu_custom_call.1} parent=1 // pred_region
      %s14 = ssub.s32 1024, 1024
      %15 = vsyncadd [#allocation3], %s14
      %s16 = sshll.u32 [#allocation2], 4
      %s17 = int_to_ptr.vmem [resolvable:$true] %s16
      %22 = dma.hbm_to_vmem [thread:$0]  %s0, 1024, %s17, [#allocation3], 512, 512, 32
    $region5: #{tpu_custom_call.1} parent=1 // pred_fallthru
      _
    // Predicated region
    $region6: #{tpu_custom_call.1} parent=1 // pred_check
      _
    $region7: #{tpu_custom_call.1} parent=1 // pred_check_branch
      %24 = sbr.rel (0) target = $region9
    $region8: #{tpu_custom_call.1} parent=1 // pred_region
      %s26 = ssub.s32 16384, 16384
      %27 = vsyncadd [#allocation6], %s26
      %s28 = sshll.u32 [#allocation5], 4
      %s29 = int_to_ptr.vmem [resolvable:$true] %s28
      %34 = dma.hbm_to_vmem [thread:$0]  %s1, 16384, %s29, [#allocation6], 256, 256, 16
    $region9: #{tpu_custom_call.1} parent=1 // pred_fallthru
      _
    // Predicated region
    $region10: #{tpu_custom_call.1} parent=1 // pred_check
      _
    $region11: #{tpu_custom_call.1} parent=1 // pred_check_branch
      %36 = sbr.rel (0) target = $region13
    $region12: #{tpu_custom_call.1} parent=1 // pred_region
      _
    $region13: #{tpu_custom_call.1} parent=1 // pred_fallthru
      _
    // Predicated region
    $region14: #{tpu_custom_call.1} parent=1 // pred_check
      _
    $region15: #{tpu_custom_call.1} parent=1 // pred_check_branch
      %38 = sbr.rel (0) target = $region17
    $region16: #{tpu_custom_call.1} parent=1 // pred_region
      %39 = dma.done [#allocation3], 1024
    $region17: #{tpu_custom_call.1} parent=1 // pred_fallthru
      _
    // Predicated region
    $region18: #{tpu_custom_call.1} parent=1 // pred_check
      _
    $region19: #{tpu_custom_call.1} parent=1 // pred_check_branch
      %41 = sbr.rel (0) target = $region21
    $region20: #{tpu_custom_call.1} parent=1 // pred_region
      %42 = dma.done [#allocation6], 16384
    $region21: #{tpu_custom_call.1} parent=1 // pred_fallthru
      _
    %v43 = vld [vmem:[#allocation2] sm:$0xff]
    %v44 = vld [vmem:[#allocation2 + $0x8] sm:$0xff]
    %v45 = vld [vmem:[#allocation2 + $0x10] sm:$0xff]
    %v46 = vld [vmem:[#allocation2 + $0x18] sm:$0xff]
    %v47 = vld [vmem:[#allocation2 + $0x20] sm:$0xff]
    %v48 = vld [vmem:[#allocation2 + $0x28] sm:$0xff]
    %v49 = vld [vmem:[#allocation2 + $0x30] sm:$0xff]
    %v50 = vld [vmem:[#allocation2 + $0x38] sm:$0xff]
    %v51 = vld [vmem:[#allocation5] sm:$0xff]
    %v52 = vld [vmem:[#allocation5 + $0x8] sm:$0xff]
    %v53 = vld [vmem:[#allocation5 + $0x10] sm:$0xff]
    %v54 = vld [vmem:[#allocation5 + $0x18] sm:$0xff]
    %v55 = vld [vmem:[#allocation5 + $0x20] sm:$0xff]
    %v56 = vld [vmem:[#allocation5 + $0x28] sm:$0xff]
    %v57 = vld [vmem:[#allocation5 + $0x30] sm:$0xff]
    %v58 = vld [vmem:[#allocation5 + $0x38] sm:$0xff]
    %v59 = vld [vmem:[#allocation5 + $0x40] sm:$0xff]
    %v60 = vld [vmem:[#allocation5 + $0x48] sm:$0xff]
    %v61 = vld [vmem:[#allocation5 + $0x50] sm:$0xff]
    %v62 = vld [vmem:[#allocation5 + $0x58] sm:$0xff]
    %v63 = vld [vmem:[#allocation5 + $0x60] sm:$0xff]
    %v64 = vld [vmem:[#allocation5 + $0x68] sm:$0xff]
    %v65 = vld [vmem:[#allocation5 + $0x70] sm:$0xff]
    %v66 = vld [vmem:[#allocation5 + $0x78] sm:$0xff]
    %v67 = vld [vmem:[#allocation5 + $0x80] sm:$0xff]
    %v68 = vld [vmem:[#allocation5 + $0x88] sm:$0xff]
    %v69 = vld [vmem:[#allocation5 + $0x90] sm:$0xff]
    %v70 = vld [vmem:[#allocation5 + $0x98] sm:$0xff]
    %v71 = vld [vmem:[#allocation5 + $0xa0] sm:$0xff]
    %v72 = vld [vmem:[#allocation5 + $0xa8] sm:$0xff]
    %v73 = vld [vmem:[#allocation5 + $0xb0] sm:$0xff]
    %v74 = vld [vmem:[#allocation5 + $0xb8] sm:$0xff]
    %v75 = vld [vmem:[#allocation5 + $0xc0] sm:$0xff]
    %v76 = vld [vmem:[#allocation5 + $0xc8] sm:$0xff]
    %v77 = vld [vmem:[#allocation5 + $0xd0] sm:$0xff]
    %v78 = vld [vmem:[#allocation5 + $0xd8] sm:$0xff]
    %v79 = vld [vmem:[#allocation5 + $0xe0] sm:$0xff]
    %v80 = vld [vmem:[#allocation5 + $0xe8] sm:$0xff]
    %v81 = vld [vmem:[#allocation5 + $0xf0] sm:$0xff]
    %v82 = vld [vmem:[#allocation5 + $0xf8] sm:$0xff]
    %v83 = vld [vmem:[#allocation5 + $0x100] sm:$0xff]
    %v84 = vld [vmem:[#allocation5 + $0x108] sm:$0xff]
    %v85 = vld [vmem:[#allocation5 + $0x110] sm:$0xff]
    %v86 = vld [vmem:[#allocation5 + $0x118] sm:$0xff]
    %v87 = vld [vmem:[#allocation5 + $0x120] sm:$0xff]
    %v88 = vld [vmem:[#allocation5 + $0x128] sm:$0xff]
    %v89 = vld [vmem:[#allocation5 + $0x130] sm:$0xff]
    %v90 = vld [vmem:[#allocation5 + $0x138] sm:$0xff]
    %v91 = vld [vmem:[#allocation5 + $0x140] sm:$0xff]
    %v92 = vld [vmem:[#allocation5 + $0x148] sm:$0xff]
    %v93 = vld [vmem:[#allocation5 + $0x150] sm:$0xff]
    %v94 = vld [vmem:[#allocation5 + $0x158] sm:$0xff]
    %v95 = vld [vmem:[#allocation5 + $0x160] sm:$0xff]
    %v96 = vld [vmem:[#allocation5 + $0x168] sm:$0xff]
    %v97 = vld [vmem:[#allocation5 + $0x170] sm:$0xff]
    %v98 = vld [vmem:[#allocation5 + $0x178] sm:$0xff]
    %v99 = vld [vmem:[#allocation5 + $0x180] sm:$0xff]
    %v100 = vld [vmem:[#allocation5 + $0x188] sm:$0xff]
    %v101 = vld [vmem:[#allocation5 + $0x190] sm:$0xff]
    %v102 = vld [vmem:[#allocation5 + $0x198] sm:$0xff]
    %v103 = vld [vmem:[#allocation5 + $0x1a0] sm:$0xff]
    %v104 = vld [vmem:[#allocation5 + $0x1a8] sm:$0xff]
    %v105 = vld [vmem:[#allocation5 + $0x1b0] sm:$0xff]
    %v106 = vld [vmem:[#allocation5 + $0x1b8] sm:$0xff]
    %v107 = vld [vmem:[#allocation5 + $0x1c0] sm:$0xff]
    %v108 = vld [vmem:[#allocation5 + $0x1c8] sm:$0xff]
    %v109 = vld [vmem:[#allocation5 + $0x1d0] sm:$0xff]
    %v110 = vld [vmem:[#allocation5 + $0x1d8] sm:$0xff]
    %v111 = vld [vmem:[#allocation5 + $0x1e0] sm:$0xff]
    %v112 = vld [vmem:[#allocation5 + $0x1e8] sm:$0xff]
    %v113 = vld [vmem:[#allocation5 + $0x1f0] sm:$0xff]
    %v114 = vld [vmem:[#allocation5 + $0x1f8] sm:$0xff]
    %v115 = vld [vmem:[#allocation5 + $0x200] sm:$0xff]
    %v116 = vld [vmem:[#allocation5 + $0x208] sm:$0xff]
    %v117 = vld [vmem:[#allocation5 + $0x210] sm:$0xff]
    %v118 = vld [vmem:[#allocation5 + $0x218] sm:$0xff]
    %v119 = vld [vmem:[#allocation5 + $0x220] sm:$0xff]
    %v120 = vld [vmem:[#allocation5 + $0x228] sm:$0xff]
    %v121 = vld [vmem:[#allocation5 + $0x230] sm:$0xff]
    %v122 = vld [vmem:[#allocation5 + $0x238] sm:$0xff]
    %v123 = vld [vmem:[#allocation5 + $0x240] sm:$0xff]
    %v124 = vld [vmem:[#allocation5 + $0x248] sm:$0xff]
    %v125 = vld [vmem:[#allocation5 + $0x250] sm:$0xff]
    %v126 = vld [vmem:[#allocation5 + $0x258] sm:$0xff]
    %v127 = vld [vmem:[#allocation5 + $0x260] sm:$0xff]
    %v128 = vld [vmem:[#allocation5 + $0x268] sm:$0xff]
    %v129 = vld [vmem:[#allocation5 + $0x270] sm:$0xff]
    %v130 = vld [vmem:[#allocation5 + $0x278] sm:$0xff]
    %v131 = vld [vmem:[#allocation5 + $0x280] sm:$0xff]
    %v132 = vld [vmem:[#allocation5 + $0x288] sm:$0xff]
    %v133 = vld [vmem:[#allocation5 + $0x290] sm:$0xff]
    %v134 = vld [vmem:[#allocation5 + $0x298] sm:$0xff]
    %v135 = vld [vmem:[#allocation5 + $0x2a0] sm:$0xff]
    %v136 = vld [vmem:[#allocation5 + $0x2a8] sm:$0xff]
    %v137 = vld [vmem:[#allocation5 + $0x2b0] sm:$0xff]
    %v138 = vld [vmem:[#allocation5 + $0x2b8] sm:$0xff]
    %v139 = vld [vmem:[#allocation5 + $0x2c0] sm:$0xff]
    %v140 = vld [vmem:[#allocation5 + $0x2c8] sm:$0xff]
    %v141 = vld [vmem:[#allocation5 + $0x2d0] sm:$0xff]
    %v142 = vld [vmem:[#allocation5 + $0x2d8] sm:$0xff]
    %v143 = vld [vmem:[#allocation5 + $0x2e0] sm:$0xff]
    %v144 = vld [vmem:[#allocation5 + $0x2e8] sm:$0xff]
    %v145 = vld [vmem:[#allocation5 + $0x2f0] sm:$0xff]
    %v146 = vld [vmem:[#allocation5 + $0x2f8] sm:$0xff]
    %v147 = vld [vmem:[#allocation5 + $0x300] sm:$0xff]
    %v148 = vld [vmem:[#allocation5 + $0x308] sm:$0xff]
    %v149 = vld [vmem:[#allocation5 + $0x310] sm:$0xff]
    %v150 = vld [vmem:[#allocation5 + $0x318] sm:$0xff]
    %v151 = vld [vmem:[#allocation5 + $0x320] sm:$0xff]
    %v152 = vld [vmem:[#allocation5 + $0x328] sm:$0xff]
    %v153 = vld [vmem:[#allocation5 + $0x330] sm:$0xff]
    %v154 = vld [vmem:[#allocation5 + $0x338] sm:$0xff]
    %v155 = vld [vmem:[#allocation5 + $0x340] sm:$0xff]
    %v156 = vld [vmem:[#allocation5 + $0x348] sm:$0xff]
    %v157 = vld [vmem:[#allocation5 + $0x350] sm:$0xff]
    %v158 = vld [vmem:[#allocation5 + $0x358] sm:$0xff]
    %v159 = vld [vmem:[#allocation5 + $0x360] sm:$0xff]
    %v160 = vld [vmem:[#allocation5 + $0x368] sm:$0xff]
    %v161 = vld [vmem:[#allocation5 + $0x370] sm:$0xff]
    %v162 = vld [vmem:[#allocation5 + $0x378] sm:$0xff]
    %v163 = vld [vmem:[#allocation5 + $0x380] sm:$0xff]
    %v164 = vld [vmem:[#allocation5 + $0x388] sm:$0xff]
    %v165 = vld [vmem:[#allocation5 + $0x390] sm:$0xff]
    %v166 = vld [vmem:[#allocation5 + $0x398] sm:$0xff]
    %v167 = vld [vmem:[#allocation5 + $0x3a0] sm:$0xff]
    %v168 = vld [vmem:[#allocation5 + $0x3a8] sm:$0xff]
    %v169 = vld [vmem:[#allocation5 + $0x3b0] sm:$0xff]
    %v170 = vld [vmem:[#allocation5 + $0x3b8] sm:$0xff]
    %v171 = vld [vmem:[#allocation5 + $0x3c0] sm:$0xff]
    %v172 = vld [vmem:[#allocation5 + $0x3c8] sm:$0xff]
    %v173 = vld [vmem:[#allocation5 + $0x3d0] sm:$0xff]
    %v174 = vld [vmem:[#allocation5 + $0x3d8] sm:$0xff]
    %v175 = vld [vmem:[#allocation5 + $0x3e0] sm:$0xff]
    %v176 = vld [vmem:[#allocation5 + $0x3e8] sm:$0xff]
    %v177 = vld [vmem:[#allocation5 + $0x3f0] sm:$0xff]
    %v178 = vld [vmem:[#allocation5 + $0x3f8] sm:$0xff]
    %v179 = vld [vmem:[%s2] sm:$0x3]
    %v181 = vlaneseq
    %v182 = vshrl.u32 %v181, 7
    %v183 = vsub.s32 0, %v182
    %v184 = vrot.slane %v179, %v183
    %v185 = vlaneseq
    %v186 = vshrl.u32 %v185, 7
    %v187 = vsub.s32 1, %v186
    %v188 = vrot.slane %v179, %v187
    %191 = vmatprep.subr.mxu0 %v52
    %192 = vmatpush1.msra.mxu0 %v51
    %193 = vmatprep.subr.mxu0 %v54
    %194 = vmatpush1.msra.mxu0 %v53
    %195 = vmatprep.subr.mxu0 %v56
    %196 = vmatpush1.msra.mxu0 %v55
    %197 = vmatprep.subr.mxu0 %v58
    %198 = vmatpush1.msra.mxu0 %v57
    %199 = vmatprep.subr.mxu0 %v60
    %200 = vmatpush1.msra.mxu0 %v59
    %201 = vmatprep.subr.mxu0 %v62
    %202 = vmatpush1.msra.mxu0 %v61
    %203 = vmatprep.subr.mxu0 %v64
    %204 = vmatpush1.msra.mxu0 %v63
    %205 = vmatprep.subr.mxu0 %v66
    %206 = vmatpush1.msra.mxu0 %v65
    %207 = vmatprep.subr.mxu0 %v68
    %208 = vmatpush1.msra.mxu0 %v67
    %209 = vmatprep.subr.mxu0 %v70
    %210 = vmatpush1.msra.mxu0 %v69
    %211 = vmatprep.subr.mxu0 %v72
    %212 = vmatpush1.msra.mxu0 %v71
    %213 = vmatprep.subr.mxu0 %v74
    %214 = vmatpush1.msra.mxu0 %v73
    %215 = vmatprep.subr.mxu0 %v76
    %216 = vmatpush1.msra.mxu0 %v75
    %217 = vmatprep.subr.mxu0 %v78
    %218 = vmatpush1.msra.mxu0 %v77
    %219 = vmatprep.subr.mxu0 %v80
    %220 = vmatpush1.msra.mxu0 %v79
    %221 = vmatprep.subr.mxu0 %v82
    %222 = vmatpush1.msra.mxu0 %v81
    %223 = vmatprep.subr.mxu0 %v84
    %224 = vmatpush1.msra.mxu0 %v83
    %225 = vmatprep.subr.mxu0 %v86
    %226 = vmatpush1.msra.mxu0 %v85
    %227 = vmatprep.subr.mxu0 %v88
    %228 = vmatpush1.msra.mxu0 %v87
    %229 = vmatprep.subr.mxu0 %v90
    %230 = vmatpush1.msra.mxu0 %v89
    %231 = vmatprep.subr.mxu0 %v92
    %232 = vmatpush1.msra.mxu0 %v91
    %233 = vmatprep.subr.mxu0 %v94
    %234 = vmatpush1.msra.mxu0 %v93
    %235 = vmatprep.subr.mxu0 %v96
    %236 = vmatpush1.msra.mxu0 %v95
    %237 = vmatprep.subr.mxu0 %v98
    %238 = vmatpush1.msra.mxu0 %v97
    %239 = vmatprep.subr.mxu0 %v100
    %240 = vmatpush1.msra.mxu0 %v99
    %241 = vmatprep.subr.mxu0 %v102
    %242 = vmatpush1.msra.mxu0 %v101
    %243 = vmatprep.subr.mxu0 %v104
    %244 = vmatpush1.msra.mxu0 %v103
    %245 = vmatprep.subr.mxu0 %v106
    %246 = vmatpush1.msra.mxu0 %v105
    %247 = vmatprep.subr.mxu0 %v108
    %248 = vmatpush1.msra.mxu0 %v107
    %249 = vmatprep.subr.mxu0 %v110
    %250 = vmatpush1.msra.mxu0 %v109
    %251 = vmatprep.subr.mxu0 %v112
    %252 = vmatpush1.msra.mxu0 %v111
    %253 = vmatprep.subr.mxu0 %v114
    %254 = vmatpush1.msra.mxu0 %v113
    %255 = vmatprep.mubr.f32.mxu0 %v44
    %256 = vmatmul.mubr.f32.gmra.mrb[0].mxu0 %v43
    %v257 = vpop.f32.mrb[0].mxu0
    %v258 = vadd.f32 %v184, %v257
    %v259 = vpop.f32.mrb[0].mxu0
    %v260 = vadd.f32 %v188, %v259
    %261 = vmatprep.mubr.f32.mxu0 %v48
    %262 = vmatmul.mubr.f32.gmra.mrb[0].mxu0 %v47
    %v263 = vpop.f32.mrb[0].mxu0
    %v264 = vadd.f32 %v184, %v263
    %v265 = vpop.f32.mrb[0].mxu0
    %v266 = vadd.f32 %v188, %v265
    %267 = vdwg.mxu0
    %268 = vmatprep.subr.mxu0 %v116
    %269 = vmatpush1.msra.mxu0 %v115
    %270 = vmatprep.subr.mxu0 %v118
    %271 = vmatpush1.msra.mxu0 %v117
    %272 = vmatprep.subr.mxu0 %v120
    %273 = vmatpush1.msra.mxu0 %v119
    %274 = vmatprep.subr.mxu0 %v122
    %275 = vmatpush1.msra.mxu0 %v121
    %276 = vmatprep.subr.mxu0 %v124
    %277 = vmatpush1.msra.mxu0 %v123
    %278 = vmatprep.subr.mxu0 %v126
    %279 = vmatpush1.msra.mxu0 %v125
    %280 = vmatprep.subr.mxu0 %v128
    %281 = vmatpush1.msra.mxu0 %v127
    %282 = vmatprep.subr.mxu0 %v130
    %283 = vmatpush1.msra.mxu0 %v129
    %284 = vmatprep.subr.mxu0 %v132
    %285 = vmatpush1.msra.mxu0 %v131
    %286 = vmatprep.subr.mxu0 %v134
    %287 = vmatpush1.msra.mxu0 %v133
    %288 = vmatprep.subr.mxu0 %v136
    %289 = vmatpush1.msra.mxu0 %v135
    %290 = vmatprep.subr.mxu0 %v138
    %291 = vmatpush1.msra.mxu0 %v137
    %292 = vmatprep.subr.mxu0 %v140
    %293 = vmatpush1.msra.mxu0 %v139
    %294 = vmatprep.subr.mxu0 %v142
    %295 = vmatpush1.msra.mxu0 %v141
    %296 = vmatprep.subr.mxu0 %v144
    %297 = vmatpush1.msra.mxu0 %v143
    %298 = vmatprep.subr.mxu0 %v146
    %299 = vmatpush1.msra.mxu0 %v145
    %300 = vmatprep.subr.mxu0 %v148
    %301 = vmatpush1.msra.mxu0 %v147
    %302 = vmatprep.subr.mxu0 %v150
    %303 = vmatpush1.msra.mxu0 %v149
    %304 = vmatprep.subr.mxu0 %v152
    %305 = vmatpush1.msra.mxu0 %v151
    %306 = vmatprep.subr.mxu0 %v154
    %307 = vmatpush1.msra.mxu0 %v153
    %308 = vmatprep.subr.mxu0 %v156
    %309 = vmatpush1.msra.mxu0 %v155
    %310 = vmatprep.subr.mxu0 %v158
    %311 = vmatpush1.msra.mxu0 %v157
    %312 = vmatprep.subr.mxu0 %v160
    %313 = vmatpush1.msra.mxu0 %v159
    %314 = vmatprep.subr.mxu0 %v162
    %315 = vmatpush1.msra.mxu0 %v161
    %316 = vmatprep.subr.mxu0 %v164
    %317 = vmatpush1.msra.mxu0 %v163
    %318 = vmatprep.subr.mxu0 %v166
    %319 = vmatpush1.msra.mxu0 %v165
    %320 = vmatprep.subr.mxu0 %v168
    %321 = vmatpush1.msra.mxu0 %v167
    %322 = vmatprep.subr.mxu0 %v170
    %323 = vmatpush1.msra.mxu0 %v169
    %324 = vmatprep.subr.mxu0 %v172
    %325 = vmatpush1.msra.mxu0 %v171
    %326 = vmatprep.subr.mxu0 %v174
    %327 = vmatpush1.msra.mxu0 %v173
    %328 = vmatprep.subr.mxu0 %v176
    %329 = vmatpush1.msra.mxu0 %v175
    %330 = vmatprep.subr.mxu0 %v178
    %331 = vmatpush1.msra.mxu0 %v177
    %332 = vmatprep.mubr.f32.mxu0 %v46
    %333 = vmatmul.mubr.f32.gmra.mrb[0].mxu0 %v45
    %v334 = vpop.f32.mrb[0].mxu0
    %v335 = vadd.f32 %v258, %v334
    %v336 = vpop.f32.mrb[0].mxu0
    %v337 = vadd.f32 %v260, %v336
    %338 = vmatprep.mubr.f32.mxu0 %v50
    %339 = vmatmul.mubr.f32.gmra.mrb[0].mxu0 %v49
    %v340 = vpop.f32.mrb[0].mxu0
    %v341 = vadd.f32 %v264, %v340
    %v342 = vpop.f32.mrb[0].mxu0
    %v343 = vadd.f32 %v266, %v342
    %344 = vdwg.mxu0
    %345 = vst [vmem:[#allocation7] sm:$0xff] %v335
    %346 = vst [vmem:[#allocation7 + $0x8] sm:$0xff] %v337
    %347 = vst [vmem:[#allocation7 + $0x10] sm:$0xff] %v341
    %348 = vst [vmem:[#allocation7 + $0x18] sm:$0xff] %v343
    // Predicated region
    $region22: #{tpu_custom_call.1} parent=1 // pred_check
      _
    $region23: #{tpu_custom_call.1} parent=1 // pred_check_branch
      %350 = sbr.rel (0) target = $region25
    $region24: #{tpu_custom_call.1} parent=1 // pred_region
      %s352 = ssub.s32 512, 512
      %353 = vsyncadd [#allocation4], %s352
      %s354 = sshll.u32 [#allocation7], 4
      %s355 = int_to_ptr.vmem [resolvable:$true] %s354
      %360 = dma.vmem_to_hbm [thread:$0]  %s355, 512, %s3, [#allocation4], 256, 256, 16
    $region25: #{tpu_custom_call.1} parent=1 // pred_fallthru
      _
    // Predicated region
    $region26: #{tpu_custom_call.1} parent=1 // pred_check
      _
    $region27: #{tpu_custom_call.1} parent=1 // pred_check_branch
      %362 = sbr.rel (0) target = $region29
    $region28: #{tpu_custom_call.1} parent=1 // pred_region
      %363 = dma.done [#allocation4], 512
    $region29: #{tpu_custom_call.1} parent=1 // pred_fallthru
      _
    %364 = vsyncpa [#allocation3], 1
    %365 = vsyncpa [#allocation6], 1
    %366 = vsyncpa [#allocation4], 1

</llo_original>
